<compile_context>
chip_gen: v5e
topology: v5e:2x2
jax: 0.10.0
libtpu: 0.0.40
codegen_flags: <defaults>
</compile_context>

<pallas_src>
import math

import jax
import jax.numpy as jnp
from jax.experimental import pallas as pl
from jax.experimental.pallas import tpu as pltpu


def positionalencoding1d(d_model: int, length: int) -> jnp.ndarray:
    """JAX port of the PyTorch helper: (length, d_model) sin/cos table."""
    if d_model % 2 != 0:
        raise ValueError(
            "Cannot use sin/cos positional encoding with odd dim (got dim={:d})".format(d_model)
        )
    position = jnp.arange(0, length, dtype=jnp.float32)[:, None]          # (L, 1)
    div_term = jnp.exp(
        jnp.arange(0, d_model, 2, dtype=jnp.float32) * -(math.log(10000.0) / d_model)
    )                                                                      # (D/2,)
    pe = jnp.zeros((length, d_model), dtype=jnp.float32)
    pe = pe.at[:, 0::2].set(jnp.sin(position * div_term))
    pe = pe.at[:, 1::2].set(jnp.cos(position * div_term))
    return pe


def time_step_embedding(pe: jnp.ndarray, timesteps: jnp.ndarray, *, tm: int = 8) -> jnp.ndarray:
    """Pallas equivalent of TimeStepEmbedding.forward: pe[timesteps]."""
    orig_shape = timesteps.shape
    steps, d = pe.shape

    ts = timesteps.reshape(-1).astype(jnp.int32)
    # Safety: clamp indices so a bad timestep can't drive an OOB gather.
    ts = jnp.clip(ts, 0, steps - 1)

    n = ts.shape[0]
    n_blocks = -(-n // tm)          # ceil(n / tm)
    n_pad = n_blocks * tm
    if n_pad != n:
        ts = jnp.pad(ts, (0, n_pad - n))   # padded entries gather row 0 (discarded later)

    def kernel(ts_ref, pe_ref, out_ref):
        # ts_ref  : (n_pad,) int32 in SMEM (scalar prefetch)
        # pe_ref  : (steps, d) f32, full table resident in VMEM (fetched once)
        # out_ref : (tm, d) f32 output tile for this grid step
        base = pl.program_id(0) * tm
        for r in range(tm):                     # static unroll: tm dynamic row loads
            idx = ts_ref[base + r]
            out_ref[pl.ds(r, 1), :] = pe_ref[pl.ds(idx, 1), :]

    grid_spec = pltpu.PrefetchScalarGridSpec(
        num_scalar_prefetch=1,
        grid=(n_blocks,),
        in_specs=[
            # Whole pe table, constant block index -> DMA'd into VMEM once and reused.
            pl.BlockSpec((steps, d), lambda i, ts_ref: (0, 0)),
        ],
        out_specs=pl.BlockSpec((tm, d), lambda i, ts_ref: (i, 0)),
    )

    out = pl.pallas_call(
        kernel,
        out_shape=jax.ShapeDtypeStruct((n_pad, d), pe.dtype),
        grid_spec=grid_spec,
        compiler_params=pltpu.CompilerParams(
            dimension_semantics=("parallel",),   # row-groups independent; v7x megacore
        ),
        cost_estimate=pl.CostEstimate(
            flops=0,
            transcendentals=0,
            bytes_accessed=steps * d * 4 + n_pad * 4 + n_pad * d * 4,
        ),
    )(ts, pe)

    out = out[:n]
    return out.reshape(orig_shape + (d,))


class TimeStepEmbedding:
    """Mirror of the PyTorch module; `pe` built deterministically in __init__."""

    def __init__(self, emb_dim: int, diffusion_steps: int = 5000):
        self.pe = positionalencoding1d(emb_dim, diffusion_steps)

    def __call__(self, timesteps: jnp.ndarray) -> jnp.ndarray:
        return time_step_embedding(self.pe, timesteps)


if __name__ == "__main__":
    emb_dim = 128
    diffusion_steps = 5000
    batch = 8

    module = TimeStepEmbedding(emb_dim, diffusion_steps)

    key = jax.random.PRNGKey(0)
    timesteps = jax.random.randint(key, (batch,), 0, diffusion_steps, dtype=jnp.int32)

    out = module(timesteps)
    out = jax.block_until_ready(out)

    # sanity check against the pure-JAX reference gather
    ref = module.pe[timesteps]
    assert out.shape == (batch, emb_dim)
    assert jnp.allclose(out, ref, atol=0.0, rtol=0.0)

    # also exercise a ragged (non-multiple-of-TM) batch to cover the padding path
    timesteps2 = jax.random.randint(jax.random.PRNGKey(1), (13,), 0, diffusion_steps, dtype=jnp.int32)
    out2 = jax.block_until_ready(module(timesteps2))
    assert jnp.allclose(out2, module.pe[timesteps2], atol=0.0, rtol=0.0)

    print("KERNEL_OK")
</pallas_src>

<mosaic_0001>
module attributes {stable_mosaic.version = 11 : i64} {
  func.func @kernel(%arg0: i32, %arg1: memref<8xi32, #tpu.memory_space<smem>>, %arg2: memref<5000x128xf32, #tpu.memory_space<vmem>>, %arg3: memref<8x128xf32, #tpu.memory_space<vmem>>) attributes {dimension_semantics = [#tpu.dimension_semantics<parallel>], iteration_bounds = array<i64: 1>, scalar_prefetch = 1 : i64, scratch_operands = 0 : i64, tpu.core_type = #tpu.core_type<tc>, window_params = [{pipeline_mode = #tpu.pipeline_mode<synchronous>, transform_indices = @transform_0, window_bounds = array<i64: 5000, 128>}, {transform_indices = @transform_1, window_bounds = array<i64: 8, 128>}]} {
    %c8_i32 = arith.constant 8 : i32
    %0 = arith.muli %arg0, %c8_i32 : i32
    %c0_i32 = arith.constant 0 : i32
    %1 = arith.addi %0, %c0_i32 : i32
    %2 = arith.index_cast %1 : i32 to index
    %3 = memref.load %arg1[%2] : memref<8xi32, #tpu.memory_space<smem>>
    %4 = arith.index_cast %3 : i32 to index
    %c0 = arith.constant 0 : index
    %5 = vector.load %arg2[%4, %c0] : memref<5000x128xf32, #tpu.memory_space<vmem>>, vector<1x128xf32>
    %c0_0 = arith.constant 0 : index
    %c0_1 = arith.constant 0 : index
    %6 = vector.load %arg3[%c0_0, %c0_1] : memref<8x128xf32, #tpu.memory_space<vmem>>, vector<1x128xf32>
    tpu.vector_store %arg3[%c0_0, %c0_1], %5 {strides = array<i32>} : memref<8x128xf32, #tpu.memory_space<vmem>>, vector<1x128xf32>,
    %c1_i32 = arith.constant 1 : i32
    %7 = arith.addi %0, %c1_i32 : i32
    %8 = arith.index_cast %7 : i32 to index
    %9 = memref.load %arg1[%8] : memref<8xi32, #tpu.memory_space<smem>>
    %10 = arith.index_cast %9 : i32 to index
    %c0_2 = arith.constant 0 : index
    %11 = vector.load %arg2[%10, %c0_2] : memref<5000x128xf32, #tpu.memory_space<vmem>>, vector<1x128xf32>
    %c1 = arith.constant 1 : index
    %c0_3 = arith.constant 0 : index
    %12 = vector.load %arg3[%c1, %c0_3] : memref<8x128xf32, #tpu.memory_space<vmem>>, vector<1x128xf32>
    tpu.vector_store %arg3[%c1, %c0_3], %11 {strides = array<i32>} : memref<8x128xf32, #tpu.memory_space<vmem>>, vector<1x128xf32>,
    %c2_i32 = arith.constant 2 : i32
    %13 = arith.addi %0, %c2_i32 : i32
    %14 = arith.index_cast %13 : i32 to index
    %15 = memref.load %arg1[%14] : memref<8xi32, #tpu.memory_space<smem>>
    %16 = arith.index_cast %15 : i32 to index
    %c0_4 = arith.constant 0 : index
    %17 = vector.load %arg2[%16, %c0_4] : memref<5000x128xf32, #tpu.memory_space<vmem>>, vector<1x128xf32>
    %c2 = arith.constant 2 : index
    %c0_5 = arith.constant 0 : index
    %18 = vector.load %arg3[%c2, %c0_5] : memref<8x128xf32, #tpu.memory_space<vmem>>, vector<1x128xf32>
    tpu.vector_store %arg3[%c2, %c0_5], %17 {strides = array<i32>} : memref<8x128xf32, #tpu.memory_space<vmem>>, vector<1x128xf32>,
    %c3_i32 = arith.constant 3 : i32
    %19 = arith.addi %0, %c3_i32 : i32
    %20 = arith.index_cast %19 : i32 to index
    %21 = memref.load %arg1[%20] : memref<8xi32, #tpu.memory_space<smem>>
    %22 = arith.index_cast %21 : i32 to index
    %c0_6 = arith.constant 0 : index
    %23 = vector.load %arg2[%22, %c0_6] : memref<5000x128xf32, #tpu.memory_space<vmem>>, vector<1x128xf32>
    %c3 = arith.constant 3 : index
    %c0_7 = arith.constant 0 : index
    %24 = vector.load %arg3[%c3, %c0_7] : memref<8x128xf32, #tpu.memory_space<vmem>>, vector<1x128xf32>
    tpu.vector_store %arg3[%c3, %c0_7], %23 {strides = array<i32>} : memref<8x128xf32, #tpu.memory_space<vmem>>, vector<1x128xf32>,
    %c4_i32 = arith.constant 4 : i32
    %25 = arith.addi %0, %c4_i32 : i32
    %26 = arith.index_cast %25 : i32 to index
    %27 = memref.load %arg1[%26] : memref<8xi32, #tpu.memory_space<smem>>
    %28 = arith.index_cast %27 : i32 to index
    %c0_8 = arith.constant 0 : index
    %29 = vector.load %arg2[%28, %c0_8] : memref<5000x128xf32, #tpu.memory_space<vmem>>, vector<1x128xf32>
    %c4 = arith.constant 4 : index
    %c0_9 = arith.constant 0 : index
    %30 = vector.load %arg3[%c4, %c0_9] : memref<8x128xf32, #tpu.memory_space<vmem>>, vector<1x128xf32>
    tpu.vector_store %arg3[%c4, %c0_9], %29 {strides = array<i32>} : memref<8x128xf32, #tpu.memory_space<vmem>>, vector<1x128xf32>,
    %c5_i32 = arith.constant 5 : i32
    %31 = arith.addi %0, %c5_i32 : i32
    %32 = arith.index_cast %31 : i32 to index
    %33 = memref.load %arg1[%32] : memref<8xi32, #tpu.memory_space<smem>>
    %34 = arith.index_cast %33 : i32 to index
    %c0_10 = arith.constant 0 : index
    %35 = vector.load %arg2[%34, %c0_10] : memref<5000x128xf32, #tpu.memory_space<vmem>>, vector<1x128xf32>
    %c5 = arith.constant 5 : index
    %c0_11 = arith.constant 0 : index
    %36 = vector.load %arg3[%c5, %c0_11] : memref<8x128xf32, #tpu.memory_space<vmem>>, vector<1x128xf32>
    tpu.vector_store %arg3[%c5, %c0_11], %35 {strides = array<i32>} : memref<8x128xf32, #tpu.memory_space<vmem>>, vector<1x128xf32>,
    %c6_i32 = arith.constant 6 : i32
    %37 = arith.addi %0, %c6_i32 : i32
    %38 = arith.index_cast %37 : i32 to index
    %39 = memref.load %arg1[%38] : memref<8xi32, #tpu.memory_space<smem>>
    %40 = arith.index_cast %39 : i32 to index
    %c0_12 = arith.constant 0 : index
    %41 = vector.load %arg2[%40, %c0_12] : memref<5000x128xf32, #tpu.memory_space<vmem>>, vector<1x128xf32>
    %c6 = arith.constant 6 : index
    %c0_13 = arith.constant 0 : index
    %42 = vector.load %arg3[%c6, %c0_13] : memref<8x128xf32, #tpu.memory_space<vmem>>, vector<1x128xf32>
    tpu.vector_store %arg3[%c6, %c0_13], %41 {strides = array<i32>} : memref<8x128xf32, #tpu.memory_space<vmem>>, vector<1x128xf32>,
    %c7_i32 = arith.constant 7 : i32
    %43 = arith.addi %0, %c7_i32 : i32
    %44 = arith.index_cast %43 : i32 to index
    %45 = memref.load %arg1[%44] : memref<8xi32, #tpu.memory_space<smem>>
    %46 = arith.index_cast %45 : i32 to index
    %c0_14 = arith.constant 0 : index
    %47 = vector.load %arg2[%46, %c0_14] : memref<5000x128xf32, #tpu.memory_space<vmem>>, vector<1x128xf32>
    %c7 = arith.constant 7 : index
    %c0_15 = arith.constant 0 : index
    %48 = vector.load %arg3[%c7, %c0_15] : memref<8x128xf32, #tpu.memory_space<vmem>>, vector<1x128xf32>
    tpu.vector_store %arg3[%c7, %c0_15], %47 {strides = array<i32>} : memref<8x128xf32, #tpu.memory_space<vmem>>, vector<1x128xf32>,
    return
  }
  func.func @transform_0(%arg0: i32, %arg1: memref<8xi32, #tpu.memory_space<smem>>) -> (i32, i32) {
    %c0_i32 = arith.constant 0 : i32
    %c0_i32_0 = arith.constant 0 : i32
    %c0_i32_1 = arith.constant 0 : i32
    return %c0_i32, %c0_i32_0 : i32, i32
  }
  func.func @transform_1(%arg0: i32, %arg1: memref<8xi32, #tpu.memory_space<smem>>) -> (i32, i32) {
    %c0_i32 = arith.constant 0 : i32
    %c0_i32_0 = arith.constant 0 : i32
    return %arg0, %c0_i32 : i32, i32
  }
}

</mosaic_0001>

<llo_original>
// kernel: tpu_custom_call.1
$region0: #{tpu_custom_call.1}
  #allocation0 [shape = 'u32[]', space=smem, size = 0x4, offset = 0x4, fixed_abs, tag = 'smem constant byte address 0x4 - core index']
  #allocation1 [shape = 'u32[72,128]{1,0:T(1,128)}', space=vmem, size = 0x9000, scoped, tag = 'internal scratch']
  #allocation2 [shape = 's32[1]{0}', space=sflag, size = 0x4, scoped, tag = 'scoped memory for tpu_custom_call.1']
  #allocation3 [shape = 'u8[512]{0}', space=smem, size = 0x200, scoped, tag = 'prefetched SMEM operand 0']
  %s0 = inlined_call_operand.hbm [shape: s32[8], index: 0, kind: input, shape index: {}]
  %s1 = inlined_call_operand.hbm [shape: f32[5000,128], index: 1, kind: input, shape index: {}]
  %s2 = inlined_call_operand.hbm [shape: f32[8,128], index: 2, kind: output, shape index: {}]
  %s3 = sld [smem:[#allocation0]]
  $region18: #{tpu_custom_call.1} parent=0
    _
  %s5 = ssub.s32 1, %s3
  %s6 = scalar_select 0, %s5, %s3
  %s8 = sshll.u32 %s0, 4
  %s9 = int_to_ptr.hbm [resolvable:$true] %s8
  %11 = dma.hbm_to_smem %s9, 16, [#allocation3], [#allocation2]
  %13 = dma.done [#allocation2], 16
  %14 = sfence
  $region1: #{tpu_custom_call.1} parent=0
    #allocation4 [shape = 'u8[2560000]{0}', space=vmem, size = 0x271000, scoped, tag = 'input window, operand 1, single buffered']
    #allocation5 [shape = 's32[1]{0}', space=sflag, size = 0x4, scoped, tag = 'scoped memory for tpu_custom_call.1']
    #allocation6 [shape = 's32[1]{0}', space=sflag, size = 0x4, scoped, tag = 'scoped memory for tpu_custom_call.1']
    #allocation7 [shape = 'u8[4096]{0}', space=vmem, size = 0x1000, scoped, tag = 'output window, operand 0, single buffered']
    %15 = vsyncpa [#allocation5], 0
    %16 = vsyncpa [#allocation6], 0
    // Predicated region
    $region2: #{tpu_custom_call.1} parent=1 // pred_check
      _
    $region3: #{tpu_custom_call.1} parent=1 // pred_check_branch
      %18 = sbr.rel (0) target = $region5
    $region4: #{tpu_custom_call.1} parent=1 // pred_region
      %20 = vsyncadd [#allocation5], 0
      %s21 = sshll.u32 %s1, 4
      %s22 = int_to_ptr.hbm [resolvable:$true] %s21
      %s23 = sshll.u32 [#allocation4], 4
      %s24 = int_to_ptr.vmem [resolvable:$true] %s23
      %29 = dma.hbm_to_vmem [thread:$0]  %s22, 80000, %s24, [#allocation5], 128, 128, 8
    $region5: #{tpu_custom_call.1} parent=1 // pred_fallthru
      _
    // Predicated region
    $region6: #{tpu_custom_call.1} parent=1 // pred_check
      _
    $region7: #{tpu_custom_call.1} parent=1 // pred_check_branch
      %31 = sbr.rel (0) target = $region9
    $region8: #{tpu_custom_call.1} parent=1 // pred_region
      %33 = dma.done [#allocation5], 80000
    $region9: #{tpu_custom_call.1} parent=1 // pred_fallthru
      _
    %s34 = smul.u32 0, 8
    %s35 = sld [smem:[#allocation3 + %s34]]
    %s36 = scalar_lea.vmem [#allocation4], %s35
    %v37 = vld [vmem:[%s36] sm:$0x1]
    %38 = vst [vmem:[#allocation7] sm:$0x1] %v37
    %s39 = sadd.s32 %s34, 1
    %s40 = sld [smem:[#allocation3 + %s39]]
    %s41 = scalar_lea.vmem [#allocation4], %s40
    %v42 = vld [vmem:[%s41] sm:$0x1]
    %43 = vst [vmem:[#allocation7 + $0x1] sm:$0x1] %v42
    %s44 = sadd.s32 %s34, 2
    %s45 = sld [smem:[#allocation3 + %s44]]
    %s46 = scalar_lea.vmem [#allocation4], %s45
    %v47 = vld [vmem:[%s46] sm:$0x1]
    %48 = vst [vmem:[#allocation7 + $0x2] sm:$0x1] %v47
    %s49 = sadd.s32 %s34, 3
    %s50 = sld [smem:[#allocation3 + %s49]]
    %s51 = scalar_lea.vmem [#allocation4], %s50
    %v52 = vld [vmem:[%s51] sm:$0x1]
    %53 = vst [vmem:[#allocation7 + $0x3] sm:$0x1] %v52
    %s54 = sadd.s32 %s34, 4
    %s55 = sld [smem:[#allocation3 + %s54]]
    %s56 = scalar_lea.vmem [#allocation4], %s55
    %v57 = vld [vmem:[%s56] sm:$0x1]
    %58 = vst [vmem:[#allocation7 + $0x4] sm:$0x1] %v57
    %s59 = sadd.s32 %s34, 5
    %s60 = sld [smem:[#allocation3 + %s59]]
    %s61 = scalar_lea.vmem [#allocation4], %s60
    %v62 = vld [vmem:[%s61] sm:$0x1]
    %63 = vst [vmem:[#allocation7 + $0x5] sm:$0x1] %v62
    %s64 = sadd.s32 %s34, 6
    %s65 = sld [smem:[#allocation3 + %s64]]
    %s66 = scalar_lea.vmem [#allocation4], %s65
    %v67 = vld [vmem:[%s66] sm:$0x1]
    %68 = vst [vmem:[#allocation7 + $0x6] sm:$0x1] %v67
    %s69 = sadd.s32 %s34, 7
    %s70 = sld [smem:[#allocation3 + %s69]]
    %s71 = scalar_lea.vmem [#allocation4], %s70
    %v72 = vld [vmem:[%s71] sm:$0x1]
    %73 = vst [vmem:[#allocation7 + $0x7] sm:$0x1] %v72
    // Predicated region
    $region10: #{tpu_custom_call.1} parent=1 // pred_check
      _
    $region11: #{tpu_custom_call.1} parent=1 // pred_check_branch
      %75 = sbr.rel (0) target = $region13
    $region12: #{tpu_custom_call.1} parent=1 // pred_region
      %77 = vsyncadd [#allocation6], 0
      %s79 = sshll.u32 [#allocation7], 4
      %s80 = int_to_ptr.vmem [resolvable:$true] %s79
      %s81 = sshll.u32 %s2, 4
      %s82 = int_to_ptr.hbm [resolvable:$true] %s81
      %84 = dma.vmem_to_hbm [thread:$0]  %s80, 128, %s82, [#allocation6]
    $region13: #{tpu_custom_call.1} parent=1 // pred_fallthru
      _
    // Predicated region
    $region14: #{tpu_custom_call.1} parent=1 // pred_check
      _
    $region15: #{tpu_custom_call.1} parent=1 // pred_check_branch
      %86 = sbr.rel (0) target = $region17
    $region16: #{tpu_custom_call.1} parent=1 // pred_region
      %88 = dma.done [#allocation6], 128
    $region17: #{tpu_custom_call.1} parent=1 // pred_fallthru
      _
    %89 = vsyncpa [#allocation5], 1
    %90 = vsyncpa [#allocation6], 1

</llo_original>
